<compile_context>
chip_gen: v6e
topology: v6e:2x2x1
jax: 0.10.0
libtpu: 0.0.40
codegen_flags: <defaults>
</compile_context>

<pallas_src>
import jax
import jax.numpy as jnp
from jax.experimental import pallas as pl
from jax.experimental.pallas import tpu as pltpu


def _mlp_row0_kernel(x_ref, w_ref, b_ref, o_ref, acc_ref):
    # x_ref:   (1, TD) f32 VMEM   -- row 0 of the feature matrix (lane-major)
    # w_ref:   (1, TD) f32 VMEM   -- Linear weight
    # b_ref:   (1, 1)  f32 SMEM   -- Linear bias (scalar)
    # o_ref:   (1, 1)  f32 VMEM   -- relu(x0 . w + b)
    # acc_ref: (1, 1)  f32 VMEM scratch -- running partial dot product over D
    k = pl.program_id(0)

    @pl.when(k == 0)
    def _():
        acc_ref[...] = jnp.zeros_like(acc_ref)

    # VPU elementwise multiply + XLU lane reduction; no MXU for an N=1 output,
    # and no in-kernel transpose of the (1, D) weight tile. f32 accumulation.
    acc_ref[...] += jnp.sum(x_ref[...] * w_ref[...], axis=-1, keepdims=True)

    @pl.when(k == pl.num_programs(0) - 1)
    def _():
        y = acc_ref[...] + b_ref[0, 0]
        o_ref[...] = jnp.maximum(y, 0.0).astype(o_ref.dtype)


def _pick_d_tile(D, max_lanes=8 * 1024):
    """Reduction tile TD along D: full D when small (always a legal block),
    otherwise the largest 128-multiple <= max_lanes that evenly divides D."""
    if D <= max_lanes or D % 128 != 0:
        return D
    for cand in range(max_lanes - max_lanes % 128, 127, -128):
        if D % cand == 0:
            return cand
    return 128  # unreachable: 128 divides D in this branch


def mlp_net_forward(feature, weight, bias):
    """feature: (B, D) f32, weight: (1, D) f32, bias: (1,) f32 -> (1,) f32.

    Matches `F.relu(nn.Linear(D, 1)(feature)[0])`.
    """
    _, D = feature.shape
    x0 = feature[0:1]                              # (1, D): only row 0 is needed
    w = weight.reshape(1, D).astype(jnp.float32)
    b2d = bias.reshape(1, 1).astype(jnp.float32)

    TD = _pick_d_tile(D)
    grid_k = pl.cdiv(D, TD)

    out = pl.pallas_call(
        _mlp_row0_kernel,
        out_shape=jax.ShapeDtypeStruct((1, 1), jnp.float32),
        grid_spec=pltpu.PrefetchScalarGridSpec(
            num_scalar_prefetch=0,
            grid=(grid_k,),
            in_specs=[
                pl.BlockSpec((1, TD), lambda k: (0, k)),                 # x row 0
                pl.BlockSpec((1, TD), lambda k: (0, k)),                 # weight
                pl.BlockSpec(memory_space=pltpu.MemorySpace.SMEM),       # bias
            ],
            out_specs=pl.BlockSpec((1, 1), lambda k: (0, 0)),
            scratch_shapes=[pltpu.VMEM((1, 1), jnp.float32)],
        ),
        compiler_params=pltpu.CompilerParams(
            dimension_semantics=("arbitrary",),     # D is a reduction axis
            vmem_limit_bytes=32 * 1024 * 1024,      # fits v7x (64 MiB phys) with headroom
        ),
    )(x0, w, b2d)

    # PyTorch forward returns shape (1,)
    return out.reshape(1)


def init_params(dim, key):
    """Matches MLP_net.init_weight(): xavier_uniform_ weight, uniform(0,1) bias."""
    kw, kb = jax.random.split(key)
    fan_in, fan_out = dim, 1
    bound = (6.0 / (fan_in + fan_out)) ** 0.5
    weight = jax.random.uniform(kw, (1, dim), jnp.float32, minval=-bound, maxval=bound)
    bias = jax.random.uniform(kb, (1,), jnp.float32, minval=0.0, maxval=1.0)
    return weight, bias


if __name__ == "__main__":
    key = jax.random.PRNGKey(0)
    k_feat, k_param = jax.random.split(key)

    B, D = 8, 32
    feature = jax.random.normal(k_feat, (B, D), dtype=jnp.float32)
    weight, bias = init_params(D, k_param)

    out = mlp_net_forward(feature, weight, bias)
    out = jax.block_until_ready(out)

    # reference check in plain JAX (full-batch reference, then row 0)
    ref = jnp.maximum(feature @ weight.T + bias, 0.0)[0]
    assert out.shape == (1,)
    assert jnp.allclose(out, ref, atol=1e-5, rtol=1e-5)

    print("KERNEL_OK")
</pallas_src>

<mosaic_0001>
module attributes {stable_mosaic.version = 11 : i64} {
  func.func @_mlp_row0_kernel(%arg0: i32, %arg1: memref<1x32xf32, #tpu.memory_space<vmem>>, %arg2: memref<1x32xf32, #tpu.memory_space<vmem>>, %arg3: memref<1x1xf32, #tpu.memory_space<smem>>, %arg4: memref<1x1xf32, #tpu.memory_space<vmem>>, %arg5: memref<1x1xf32, #tpu.memory_space<vmem>>) attributes {dimension_semantics = [#tpu.dimension_semantics<arbitrary>], iteration_bounds = array<i64: 1>, scalar_prefetch = 0 : i64, scratch_operands = 1 : i64, tpu.core_type = #tpu.core_type<tc>, window_params = [{transform_indices = @transform_0, window_bounds = array<i64: 1, 32>}, {transform_indices = @transform_1, window_bounds = array<i64: 1, 32>}, {transform_indices = @transform_2, window_bounds = array<i64: 1, 1>}, {pipeline_mode = #tpu.pipeline_mode<synchronous>, transform_indices = @transform_3, window_bounds = array<i64: 1, 1>}]} {
    %c0_i32 = arith.constant 0 : i32
    %0 = arith.cmpi eq, %arg0, %c0_i32 : i32
    %1 = arith.extui %0 : i1 to i32
    %c0_i32_0 = arith.constant 0 : i32
    %2 = arith.cmpi ne, %1, %c0_i32_0 : i32
    scf.if %2 {
      %cst_10 = arith.constant 0.000000e+00 : f32
      %14 = vector.broadcast %cst_10 : f32 to vector<1x1xf32>
      %c0_11 = arith.constant 0 : index
      %c0_12 = arith.constant 0 : index
      %15 = vector.load %arg5[%c0_11, %c0_12] : memref<1x1xf32, #tpu.memory_space<vmem>>, vector<1x1xf32>
      tpu.vector_store %arg5[%c0_11, %c0_12], %14 {strides = array<i32>} : memref<1x1xf32, #tpu.memory_space<vmem>>, vector<1x1xf32>,
    } else {
    }
    %c0 = arith.constant 0 : index
    %c0_1 = arith.constant 0 : index
    %3 = vector.load %arg5[%c0, %c0_1] : memref<1x1xf32, #tpu.memory_space<vmem>>, vector<1x1xf32>
    %c0_2 = arith.constant 0 : index
    %c0_3 = arith.constant 0 : index
    %4 = vector.load %arg1[%c0_2, %c0_3] : memref<1x32xf32, #tpu.memory_space<vmem>>, vector<1x32xf32>
    %c0_4 = arith.constant 0 : index
    %c0_5 = arith.constant 0 : index
    %5 = vector.load %arg2[%c0_4, %c0_5] : memref<1x32xf32, #tpu.memory_space<vmem>>, vector<1x32xf32>
    %6 = arith.mulf %4, %5 : vector<1x32xf32>
    %cst = arith.constant dense<0.000000e+00> : vector<1xf32>
    %7 = vector.multi_reduction <add>, %6, %cst [1] : vector<1x32xf32> to vector<1xf32>
    %8 = vector.shape_cast %7 : vector<1xf32> to vector<1x1xf32>
    %9 = arith.addf %3, %8 : vector<1x1xf32>
    %c0_6 = arith.constant 0 : index
    %c0_7 = arith.constant 0 : index
    %10 = vector.load %arg5[%c0_6, %c0_7] : memref<1x1xf32, #tpu.memory_space<vmem>>, vector<1x1xf32>
    tpu.vector_store %arg5[%c0_6, %c0_7], %9 {strides = array<i32>} : memref<1x1xf32, #tpu.memory_space<vmem>>, vector<1x1xf32>,
    %c0_i32_8 = arith.constant 0 : i32
    %11 = arith.cmpi eq, %arg0, %c0_i32_8 : i32
    %12 = arith.extui %11 : i1 to i32
    %c0_i32_9 = arith.constant 0 : i32
    %13 = arith.cmpi ne, %12, %c0_i32_9 : i32
    scf.if %13 {
      %c0_10 = arith.constant 0 : index
      %c0_11 = arith.constant 0 : index
      %14 = vector.load %arg5[%c0_10, %c0_11] : memref<1x1xf32, #tpu.memory_space<vmem>>, vector<1x1xf32>
      %c0_12 = arith.constant 0 : index
      %c0_13 = arith.constant 0 : index
      %15 = memref.load %arg3[%c0_12, %c0_13] : memref<1x1xf32, #tpu.memory_space<smem>>
      %16 = vector.broadcast %15 : f32 to vector<1x1xf32>
      %17 = arith.addf %14, %16 : vector<1x1xf32>
      %cst_14 = arith.constant 0.000000e+00 : f32
      %18 = vector.broadcast %cst_14 : f32 to vector<1x1xf32>
      %19 = arith.maximumf %17, %18 : vector<1x1xf32>
      %c0_15 = arith.constant 0 : index
      %c0_16 = arith.constant 0 : index
      %20 = vector.load %arg4[%c0_15, %c0_16] : memref<1x1xf32, #tpu.memory_space<vmem>>, vector<1x1xf32>
      tpu.vector_store %arg4[%c0_15, %c0_16], %19 {strides = array<i32>} : memref<1x1xf32, #tpu.memory_space<vmem>>, vector<1x1xf32>,
    } else {
    }
    return
  }
  func.func @transform_0(%arg0: i32) -> (i32, i32) {
    %c0_i32 = arith.constant 0 : i32
    %c0_i32_0 = arith.constant 0 : i32
    return %c0_i32, %arg0 : i32, i32
  }
  func.func @transform_1(%arg0: i32) -> (i32, i32) {
    %c0_i32 = arith.constant 0 : i32
    %c0_i32_0 = arith.constant 0 : i32
    return %c0_i32, %arg0 : i32, i32
  }
  func.func @transform_2(%arg0: i32) -> (i32, i32) {
    %c0_i32 = arith.constant 0 : i32
    %c0_i32_0 = arith.constant 0 : i32
    %c0_i32_1 = arith.constant 0 : i32
    return %c0_i32, %c0_i32_0 : i32, i32
  }
  func.func @transform_3(%arg0: i32) -> (i32, i32) {
    %c0_i32 = arith.constant 0 : i32
    %c0_i32_0 = arith.constant 0 : i32
    %c0_i32_1 = arith.constant 0 : i32
    return %c0_i32, %c0_i32_0 : i32, i32
  }
}

</mosaic_0001>

<llo_original>
// kernel: tpu_custom_call.1
$region0: #{tpu_custom_call.1}
  #allocation0 [shape = 'u32[]', space=smem, size = 0x4, offset = 0x4, fixed_abs, tag = 'smem constant byte address 0x4 - core index']
  #allocation1 [shape = 'u32[144,128]{1,0:T(1,128)}', space=vmem, size = 0x12000, scoped, tag = 'internal scratch']
  #allocation2 [shape = 'f32[1,1]{1,0:T(1,128)}', space=vmem, size = 0x200, scoped, tag = 'scratch operand']
  #allocation3 [shape = 'f32[1,1]{1,0:T(1,128)S(6)}', space=smem, size = 0x200, scoped, tag = 'scoped memory for tpu_custom_call.1']
  %s0 = inlined_call_operand.vmem [shape: f32[1,32], index: 0, kind: input, shape index: {}]
  %s1 = inlined_call_operand.vmem [shape: f32[1,32], index: 1, kind: input, shape index: {}]
  %s2 = inlined_call_operand.<no memory space> [shape: f32[1,1], index: 2, kind: input, shape index: {}]
  %s3 = inlined_call_operand.hbm [shape: f32[1,1], index: 3, kind: output, shape index: {}]
  %s4 = sld [smem:[#allocation0]]
  $region30: #{tpu_custom_call.1} parent=0
    _
  %s6 = ssub.s32 1, %s4
  %s7 = scalar_select 0, %s6, %s4
  %8 = sst [smem:[#allocation3]] %s2
  $region1: #{tpu_custom_call.1} parent=0
    #allocation4 [shape = 'u8[512]{0}', space=vmem, size = 0x400, scoped, tag = 'output window, operand 0, single buffered']
    #allocation5 [shape = 's32[1]{0}', space=sflag, size = 0x4, scoped, tag = 'scoped memory for tpu_custom_call.1']
    %9 = vsyncpa [#allocation5], 0
    // Predicated region
    $region2: #{tpu_custom_call.1} parent=1 // pred_check
      _
    $region3: #{tpu_custom_call.1} parent=1 // pred_check_branch
      %11 = sbr.rel (0) target = $region5
    $region4: #{tpu_custom_call.1} parent=1 // pred_region
      _
    $region5: #{tpu_custom_call.1} parent=1 // pred_fallthru
      _
    // Predicated region
    $region6: #{tpu_custom_call.1} parent=1 // pred_check
      _
    $region7: #{tpu_custom_call.1} parent=1 // pred_check_branch
      %13 = sbr.rel (0) target = $region9
    $region8: #{tpu_custom_call.1} parent=1 // pred_region
      _
    $region9: #{tpu_custom_call.1} parent=1 // pred_fallthru
      _
    // Predicated region
    $region10: #{tpu_custom_call.1} parent=1 // pred_check
      _
    $region11: #{tpu_custom_call.1} parent=1 // pred_check_branch
      %15 = sbr.rel (0) target = $region13
    $region12: #{tpu_custom_call.1} parent=1 // pred_region
      _
    $region13: #{tpu_custom_call.1} parent=1 // pred_fallthru
      _
    %p16 = scmp.eq.s32.totalorder 0, 0
    // Predicated region
    $region14: #{tpu_custom_call.1} parent=1 // pred_check
      %p17 = pneg %p16
    $region15: #{tpu_custom_call.1} parent=1 // pred_check_branch
      %19 = sbr.rel (%p17) target = $region17
    $region16: #{tpu_custom_call.1} parent=1 // pred_region
      %vm20 = vcmask 0
      %21 = vst.msk [vmem:[#allocation2] sm:$0x1] %vm20, 0.0
    $region17: #{tpu_custom_call.1} parent=1 // pred_fallthru
      _
    %v22 = vld [vmem:[#allocation2] sm:$0x1]
    %v23 = vld [vmem:[%s0] sm:$0x1]
    %v24 = vld [vmem:[%s1] sm:$0x1]
    %v25 = vmul.f32 %v23, %v24
    %vm26 = vcmask 253952
    %v27 = vsel %vm26, %v25, 0.0
    %28 = vadd.xlane.f32.xlu0 %v27
    %v29 = vpop.xlane.xlu0 %28
    %v30 = vadd.f32 %v22, %v29
    %vm31 = vcmask 0
    %32 = vst.msk [vmem:[#allocation2] sm:$0x1] %vm31, %v30
    // Predicated region
    $region18: #{tpu_custom_call.1} parent=1 // pred_check
      %p33 = pneg %p16
    $region19: #{tpu_custom_call.1} parent=1 // pred_check_branch
      %35 = sbr.rel (%p33) target = $region21
    $region20: #{tpu_custom_call.1} parent=1 // pred_region
      %v36 = vld [vmem:[#allocation2] sm:$0x1]
      %s37 = sld [smem:[#allocation3]]
      %v38 = vstv %s37
      %v39 = vadd.f32 %v36, %v38
      %v40 = vmax.f32 %v39, 0.0
      %41 = vst.msk [vmem:[#allocation4] sm:$0x1] %vm31, %v40
    $region21: #{tpu_custom_call.1} parent=1 // pred_fallthru
      _
    // Predicated region
    $region22: #{tpu_custom_call.1} parent=1 // pred_check
      _
    $region23: #{tpu_custom_call.1} parent=1 // pred_check_branch
      %43 = sbr.rel (0) target = $region25
    $region24: #{tpu_custom_call.1} parent=1 // pred_region
      %s45 = ssub.s32 16, 16
      %46 = vsyncadd [#allocation5], %s45
      %s48 = sshll.u32 [#allocation4], 4
      %s49 = int_to_ptr.vmem [resolvable:$true] %s48
      %51 = dma.vmem_to_hbm [thread:$0]  %s49, 16, %s3, [#allocation5]
    $region25: #{tpu_custom_call.1} parent=1 // pred_fallthru
      _
    // Predicated region
    $region26: #{tpu_custom_call.1} parent=1 // pred_check
      _
    $region27: #{tpu_custom_call.1} parent=1 // pred_check_branch
      %53 = sbr.rel (0) target = $region29
    $region28: #{tpu_custom_call.1} parent=1 // pred_region
      %54 = dma.done [#allocation5], 16
    $region29: #{tpu_custom_call.1} parent=1 // pred_fallthru
      _
    %55 = vsyncpa [#allocation5], 1

</llo_original>
